<compile_context>
chip_gen: v7x
topology: tpu7x:2x2x1
jax: 0.10.0
libtpu: 0.0.40
codegen_flags: <defaults>
</compile_context>

<pallas_src>
import jax
import jax.numpy as jnp
from jax import lax
from jax.experimental import pallas as pl
from jax.experimental.pallas import tpu as pltpu

LN_EPS = 1e-12  # BERT LayerNorm epsilon


def _embedding_kernel(ids_ref,        # scalar-prefetch: [N] int32 ids in SMEM
                      tok_ref,        # [TN, 1] int32 token-type ids (VMEM tile)
                      pos_ref,        # [TN, H] f32 position rows for this tile
                      type_tab_ref,   # [Tv, H] f32 token-type table (resident)
                      gamma_ref,      # [1, H] f32 LayerNorm weight (resident)
                      beta_ref,       # [1, H] f32 LayerNorm bias   (resident)
                      word_hbm_ref,   # [V, H] f32 word table, stays in HBM
                      out_ref,        # [TN, H] f32 output tile
                      gather_buf,     # VMEM scratch [TN, H] f32
                      sem):           # DMA semaphore, shape (1,)
    tn, _ = out_ref.shape
    base = pl.program_id(0) * tn

    # 1) Kick off one row DMA per token: word_table[ids[base + r]] -> gather_buf[r].
    @pl.loop(0, tn)
    def _start(r):
        idx = ids_ref[base + r]
        pltpu.make_async_copy(word_hbm_ref.at[pl.ds(idx, 1), :],
                              gather_buf.at[pl.ds(r, 1), :],
                              sem.at[0]).start()

    # 2) While the gather DMAs fly: position + token-type contributions (pure VPU).
    tok = tok_ref[...]                         # [TN, 1] int32
    type_tab = type_tab_ref[...]               # [Tv, H]
    other = pos_ref[...]
    for v in range(type_tab_ref.shape[0]):     # static, tiny (type vocab ~ 2)
        mask = (tok == v).astype(jnp.float32)  # [TN, 1]
        other = other + mask * type_tab[v:v + 1, :]

    # 3) Wait for all row gathers (each wait retires one H-row's worth of bytes).
    @pl.loop(0, tn)
    def _wait(r):
        pltpu.make_async_copy(word_hbm_ref.at[pl.ds(0, 1), :],
                              gather_buf.at[pl.ds(r, 1), :],
                              sem.at[0]).wait()

    # 4) Sum + fused LayerNorm.
    emb = gather_buf[...] + other
    mean = jnp.mean(emb, axis=-1, keepdims=True)
    centered = emb - mean
    var = jnp.mean(centered * centered, axis=-1, keepdims=True)
    normed = centered * lax.rsqrt(var + LN_EPS)
    out_ref[...] = (normed * gamma_ref[...] + beta_ref[...]).astype(out_ref.dtype)
    # Dropout is identity in eval mode.
    # TODO(synk): add train-mode dropout via pltpu.prng_seed/prng_random_bits if needed.


def _pick_tile_rows(seq_len):
    """Largest multiple-of-8 tile that divides seq_len (so tiles never cross a
    sequence boundary and the default position rows are a contiguous slice)."""
    for cand in (512, 256, 128, 64, 32, 16, 8):
        if cand <= seq_len and seq_len % cand == 0:
            return cand
    return None


def bert_embedding(input_ids, word_table, type_table, pos_table, gamma, beta,
                   token_type_ids=None, position_ids=None):
    """input_ids: [B, S] int32. Returns [B, S, H] float32."""
    batch, seq_len = input_ids.shape
    _, hidden = word_table.shape
    n_tok = batch * seq_len

    if token_type_ids is None:
        token_type_ids = jnp.zeros_like(input_ids)

    ids_flat = input_ids.reshape(n_tok).astype(jnp.int32)          # SMEM prefetch
    tok_flat = token_type_ids.reshape(n_tok, 1).astype(jnp.int32)  # VMEM tiles
    word_tab = word_table.astype(jnp.float32)                      # HBM resident
    type_tab = type_table.astype(jnp.float32)
    gamma2d = gamma.reshape(1, hidden).astype(jnp.float32)
    beta2d = beta.reshape(1, hidden).astype(jnp.float32)

    tn = _pick_tile_rows(seq_len)
    use_sliced_pos = (position_ids is None) and (tn is not None)
    if tn is None:
        tn = n_tok  # tiny/odd shapes: single full tile (block == full array dims)

    if use_sliced_pos:
        # Default path: tile's position rows are pos_table[(i % bps)*tn : ... + tn].
        blocks_per_seq = seq_len // tn
        pos_operand = pos_table.astype(jnp.float32)
        pos_spec = pl.BlockSpec((tn, hidden),
                                lambda i, ids: (i % blocks_per_seq, 0))
    else:
        # General path: materialize per-token position rows once, stream tiles.
        if position_ids is None:
            position_ids = jnp.broadcast_to(
                jnp.arange(seq_len, dtype=jnp.int32)[None, :], (batch, seq_len))
        pos_operand = jnp.take(pos_table.astype(jnp.float32),
                               position_ids.reshape(n_tok).astype(jnp.int32),
                               axis=0)
        pos_spec = pl.BlockSpec((tn, hidden), lambda i, ids: (i, 0))

    grid = (n_tok // tn,)

    # Explicit VMEM budget (double-buffered per-token tiles + gather scratch +
    # tiny resident tables), clamped well under v7x's 64 MiB physical VMEM.
    tile_bytes = tn * hidden * 4
    vmem_est = (2 * tile_bytes            # output tile (double-buffered)
                + 2 * tile_bytes          # position tile (double-buffered)
                + 2 * tn * 128 * 4        # token-type id tile, lane-padded
                + tile_bytes              # gather scratch
                + 4 * (type_tab.shape[0] + 2) * hidden * 4)
    vmem_limit = int(min(max(4 * vmem_est, 16 * 2 ** 20), 48 * 2 ** 20))

    out_flat = pl.pallas_call(
        _embedding_kernel,
        out_shape=jax.ShapeDtypeStruct((n_tok, hidden), jnp.float32),
        grid_spec=pltpu.PrefetchScalarGridSpec(
            num_scalar_prefetch=1,
            grid=grid,
            in_specs=[
                pl.BlockSpec((tn, 1), lambda i, ids: (i, 0)),          # token-type ids
                pos_spec,                                              # position rows
                pl.BlockSpec(type_tab.shape, lambda i, ids: (0, 0)),   # type table
                pl.BlockSpec((1, hidden), lambda i, ids: (0, 0)),      # gamma
                pl.BlockSpec((1, hidden), lambda i, ids: (0, 0)),      # beta
                pl.BlockSpec(memory_space=pl.ANY),                     # word table (HBM)
            ],
            out_specs=pl.BlockSpec((tn, hidden), lambda i, ids: (i, 0)),
            scratch_shapes=[
                pltpu.VMEM((tn, hidden), jnp.float32),   # row-gather buffer
                pltpu.SemaphoreType.DMA((1,)),           # gather DMA semaphore
            ],
        ),
        compiler_params=pltpu.CompilerParams(
            dimension_semantics=("parallel",),
            vmem_limit_bytes=vmem_limit,
        ),
    )(ids_flat, tok_flat, pos_operand, type_tab, gamma2d, beta2d, word_tab)

    return out_flat.reshape(batch, seq_len, hidden)


def _reference(input_ids, word_table, type_table, pos_table, gamma, beta,
               token_type_ids=None, position_ids=None):
    batch, seq_len = input_ids.shape
    if token_type_ids is None:
        token_type_ids = jnp.zeros_like(input_ids)
    if position_ids is None:
        position_ids = jnp.broadcast_to(
            jnp.arange(seq_len, dtype=jnp.int32)[None, :], input_ids.shape)
    emb = (word_table[input_ids]
           + type_table[token_type_ids]
           + pos_table[position_ids])
    mean = jnp.mean(emb, axis=-1, keepdims=True)
    var = jnp.mean((emb - mean) ** 2, axis=-1, keepdims=True)
    normed = (emb - mean) * lax.rsqrt(var + LN_EPS)
    return normed * gamma + beta


if __name__ == "__main__":
    # Small synthetic BERT-embedding config.
    batch, seq_len, hidden = 2, 8, 32
    vocab_size, type_vocab_size, max_pos = 64, 2, 16

    key = jax.random.PRNGKey(0)
    k_ids, k_tt, k_w, k_t, k_p, k_g, k_b = jax.random.split(key, 7)

    input_ids = jax.random.randint(k_ids, (batch, seq_len), 0, vocab_size,
                                   dtype=jnp.int32)
    token_type_ids = jax.random.randint(k_tt, (batch, seq_len), 0,
                                        type_vocab_size, dtype=jnp.int32)
    word_table = jax.random.normal(k_w, (vocab_size, hidden), jnp.float32) * 0.02
    type_table = jax.random.normal(k_t, (type_vocab_size, hidden), jnp.float32) * 0.02
    pos_table = jax.random.normal(k_p, (max_pos, hidden), jnp.float32) * 0.02
    gamma = 1.0 + 0.1 * jax.random.normal(k_g, (hidden,), jnp.float32)
    beta = 0.1 * jax.random.normal(k_b, (hidden,), jnp.float32)

    # Path 1: explicit token_type_ids, default (arange) positions -> sliced pos path.
    out = bert_embedding(input_ids, word_table, type_table, pos_table,
                         gamma, beta, token_type_ids=token_type_ids)
    out = jax.block_until_ready(out)
    ref = _reference(input_ids, word_table, type_table, pos_table, gamma, beta,
                     token_type_ids=token_type_ids)
    assert out.shape == (batch, seq_len, hidden)
    assert jnp.allclose(out, ref, atol=1e-4, rtol=1e-4), "mismatch vs reference (path 1)"

    # Path 2: module defaults (token_type_ids=None, position_ids=None).
    out2 = jax.block_until_ready(
        bert_embedding(input_ids, word_table, type_table, pos_table, gamma, beta))
    ref2 = _reference(input_ids, word_table, type_table, pos_table, gamma, beta)
    assert jnp.allclose(out2, ref2, atol=1e-4, rtol=1e-4), "mismatch vs reference (path 2)"

    print("KERNEL_OK")
</pallas_src>

<mosaic_0001>
module attributes {stable_mosaic.version = 11 : i64} {
  func.func @_embedding_kernel(%arg0: i32, %arg1: memref<16xi32, #tpu.memory_space<smem>>, %arg2: memref<8x1xi32, #tpu.memory_space<vmem>>, %arg3: memref<8x32xf32, #tpu.memory_space<vmem>>, %arg4: memref<2x32xf32, #tpu.memory_space<vmem>>, %arg5: memref<1x32xf32, #tpu.memory_space<vmem>>, %arg6: memref<1x32xf32, #tpu.memory_space<vmem>>, %arg7: memref<64x32xf32, #tpu.memory_space<any>>, %arg8: memref<8x32xf32, #tpu.memory_space<vmem>>, %arg9: memref<8x32xf32, #tpu.memory_space<vmem>>, %arg10: memref<1x!tpu.dma_semaphore, #tpu.memory_space<semaphore_mem>>) attributes {dimension_semantics = [#tpu.dimension_semantics<parallel>], iteration_bounds = array<i64: 2>, scalar_prefetch = 1 : i64, scratch_operands = 2 : i64, tpu.core_type = #tpu.core_type<tc>, window_params = [{transform_indices = @transform_0, window_bounds = array<i64: 8, 1>}, {transform_indices = @transform_1, window_bounds = array<i64: 8, 32>}, {pipeline_mode = #tpu.pipeline_mode<synchronous>, transform_indices = @transform_2, window_bounds = array<i64: 2, 32>}, {pipeline_mode = #tpu.pipeline_mode<synchronous>, transform_indices = @transform_3, window_bounds = array<i64: 1, 32>}, {pipeline_mode = #tpu.pipeline_mode<synchronous>, transform_indices = @transform_4, window_bounds = array<i64: 1, 32>}, {}, {transform_indices = @transform_6, window_bounds = array<i64: 8, 32>}]} {
    %c8_i32 = arith.constant 8 : i32
    %0 = arith.muli %arg0, %c8_i32 : i32
    %c0_i32 = arith.constant 0 : i32
    %c8_i32_0 = arith.constant 8 : i32
    %1 = arith.addi %c0_i32, %c8_i32_0 : i32
    %c1_i32 = arith.constant 1 : i32
    scf.for %arg11 = %c0_i32 to %1 step %c1_i32  : i32 {
      %c1_i32_25 = arith.constant 1 : i32
      %49 = arith.muli %arg11, %c1_i32_25 : i32
      %c0_i32_26 = arith.constant 0 : i32
      %50 = arith.addi %c0_i32_26, %49 : i32
      %51 = arith.addi %0, %50 : i32
      %52 = arith.index_cast %51 : i32 to index
      %53 = memref.load %arg1[%52] : memref<16xi32, #tpu.memory_space<smem>>
      %c0_i32_27 = arith.constant 0 : i32
      %c0_i32_28 = arith.constant 0 : i32
      %54 = tpu.memref_slice %arg7[%53, %c0_i32_28] : memref<64x32xf32, #tpu.memory_space<any>> -> memref<1x32xf32, #tpu.memory_space<any>>
      %c0_i32_29 = arith.constant 0 : i32
      %55 = tpu.memref_slice %arg9[%50, %c0_i32_29] : memref<8x32xf32, #tpu.memory_space<vmem>> -> memref<1x32xf32, #tpu.memory_space<vmem>>
      %56 = tpu.memref_slice %arg10[%c0_i32_27] : memref<1x!tpu.dma_semaphore, #tpu.memory_space<semaphore_mem>> -> memref<1x!tpu.dma_semaphore, #tpu.memory_space<semaphore_mem>>
      %57 = tpu.memref_squeeze %56 : memref<1x!tpu.dma_semaphore, #tpu.memory_space<semaphore_mem>> -> memref<!tpu.dma_semaphore, #tpu.memory_space<semaphore_mem>>
      tpu.enqueue_dma source(%54 : memref<1x32xf32, #tpu.memory_space<any>>) target(%55 : memref<1x32xf32, #tpu.memory_space<vmem>>) target_semaphore(%57 : memref<!tpu.dma_semaphore, #tpu.memory_space<semaphore_mem>>)
    }
    %c8_i32_1 = arith.constant 8 : i32
    %c0 = arith.constant 0 : index
    %c0_2 = arith.constant 0 : index
    %2 = vector.load %arg2[%c0, %c0_2] : memref<8x1xi32, #tpu.memory_space<vmem>>, vector<8x1xi32>
    %c0_3 = arith.constant 0 : index
    %c0_4 = arith.constant 0 : index
    %3 = vector.load %arg4[%c0_3, %c0_4] : memref<2x32xf32, #tpu.memory_space<vmem>>, vector<2x32xf32>
    %c0_5 = arith.constant 0 : index
    %c0_6 = arith.constant 0 : index
    %4 = vector.load %arg3[%c0_5, %c0_6] : memref<8x32xf32, #tpu.memory_space<vmem>>, vector<8x32xf32>
    %c0_i32_7 = arith.constant 0 : i32
    %5 = vector.broadcast %c0_i32_7 : i32 to vector<8x1xi32>
    %6 = arith.cmpi eq, %2, %5 : vector<8x1xi32>
    %7 = arith.extui %6 : vector<8x1xi1> to vector<8x1xi32>
    %8 = arith.sitofp %7 : vector<8x1xi32> to vector<8x1xf32>
    %9 = vector.extract_strided_slice %3 {offsets = [0, 0], sizes = [1, 32], strides = [1, 1]} : vector<2x32xf32> to vector<1x32xf32>
    %10 = vector.broadcast %8 : vector<8x1xf32> to vector<8x32xf32>
    %11 = vector.broadcast %9 : vector<1x32xf32> to vector<8x32xf32>
    %12 = arith.mulf %10, %11 : vector<8x32xf32>
    %13 = arith.addf %4, %12 : vector<8x32xf32>
    %c1_i32_8 = arith.constant 1 : i32
    %14 = vector.broadcast %c1_i32_8 : i32 to vector<8x1xi32>
    %15 = arith.cmpi eq, %2, %14 : vector<8x1xi32>
    %16 = arith.extui %15 : vector<8x1xi1> to vector<8x1xi32>
    %17 = arith.sitofp %16 : vector<8x1xi32> to vector<8x1xf32>
    %18 = vector.extract_strided_slice %3 {offsets = [1, 0], sizes = [1, 32], strides = [1, 1]} : vector<2x32xf32> to vector<1x32xf32>
    %19 = vector.broadcast %17 : vector<8x1xf32> to vector<8x32xf32>
    %20 = vector.broadcast %18 : vector<1x32xf32> to vector<8x32xf32>
    %21 = arith.mulf %19, %20 : vector<8x32xf32>
    %22 = arith.addf %13, %21 : vector<8x32xf32>
    %c0_i32_9 = arith.constant 0 : i32
    %c8_i32_10 = arith.constant 8 : i32
    %23 = arith.addi %c0_i32_9, %c8_i32_10 : i32
    %c1_i32_11 = arith.constant 1 : i32
    scf.for %arg11 = %c0_i32_9 to %23 step %c1_i32_11  : i32 {
      %c1_i32_25 = arith.constant 1 : i32
      %49 = arith.muli %arg11, %c1_i32_25 : i32
      %c0_i32_26 = arith.constant 0 : i32
      %50 = arith.addi %c0_i32_26, %49 : i32
      %c0_i32_27 = arith.constant 0 : i32
      %c0_i32_28 = arith.constant 0 : i32
      %c0_i32_29 = arith.constant 0 : i32
      %51 = tpu.memref_slice %arg7[%c0_i32_28, %c0_i32_29] : memref<64x32xf32, #tpu.memory_space<any>> -> memref<1x32xf32, #tpu.memory_space<any>>
      %c0_i32_30 = arith.constant 0 : i32
      %52 = tpu.memref_slice %arg9[%50, %c0_i32_30] : memref<8x32xf32, #tpu.memory_space<vmem>> -> memref<1x32xf32, #tpu.memory_space<vmem>>
      %53 = tpu.memref_slice %arg10[%c0_i32_27] : memref<1x!tpu.dma_semaphore, #tpu.memory_space<semaphore_mem>> -> memref<1x!tpu.dma_semaphore, #tpu.memory_space<semaphore_mem>>
      %54 = tpu.memref_squeeze %53 : memref<1x!tpu.dma_semaphore, #tpu.memory_space<semaphore_mem>> -> memref<!tpu.dma_semaphore, #tpu.memory_space<semaphore_mem>>
      tpu.wait_dma2 semaphore(%54 : memref<!tpu.dma_semaphore, #tpu.memory_space<semaphore_mem>>) src(%51 : memref<1x32xf32, #tpu.memory_space<any>>) dst(%52 : memref<1x32xf32, #tpu.memory_space<vmem>>)
    }
    %c8_i32_12 = arith.constant 8 : i32
    %c0_13 = arith.constant 0 : index
    %c0_14 = arith.constant 0 : index
    %24 = vector.load %arg9[%c0_13, %c0_14] : memref<8x32xf32, #tpu.memory_space<vmem>>, vector<8x32xf32>
    %25 = arith.addf %24, %22 : vector<8x32xf32>
    %cst = arith.constant dense<0.000000e+00> : vector<8xf32>
    %26 = vector.multi_reduction <add>, %25, %cst [1] : vector<8x32xf32> to vector<8xf32>
    %27 = vector.shape_cast %26 : vector<8xf32> to vector<8x1xf32>
    %cst_15 = arith.constant 3.200000e+01 : f32
    %28 = vector.broadcast %cst_15 : f32 to vector<8x1xf32>
    %29 = arith.divf %27, %28 : vector<8x1xf32>
    %30 = vector.broadcast %29 : vector<8x1xf32> to vector<8x32xf32>
    %31 = arith.subf %25, %30 : vector<8x32xf32>
    %32 = arith.mulf %31, %31 : vector<8x32xf32>
    %cst_16 = arith.constant dense<0.000000e+00> : vector<8xf32>
    %33 = vector.multi_reduction <add>, %32, %cst_16 [1] : vector<8x32xf32> to vector<8xf32>
    %34 = vector.shape_cast %33 : vector<8xf32> to vector<8x1xf32>
    %cst_17 = arith.constant 3.200000e+01 : f32
    %35 = vector.broadcast %cst_17 : f32 to vector<8x1xf32>
    %36 = arith.divf %34, %35 : vector<8x1xf32>
    %cst_18 = arith.constant 9.99999996E-13 : f32
    %37 = vector.broadcast %cst_18 : f32 to vector<8x1xf32>
    %38 = arith.addf %36, %37 : vector<8x1xf32>
    %39 = math.rsqrt %38 : vector<8x1xf32>
    %40 = vector.broadcast %39 : vector<8x1xf32> to vector<8x32xf32>
    %41 = arith.mulf %31, %40 : vector<8x32xf32>
    %c0_19 = arith.constant 0 : index
    %c0_20 = arith.constant 0 : index
    %42 = vector.load %arg5[%c0_19, %c0_20] : memref<1x32xf32, #tpu.memory_space<vmem>>, vector<1x32xf32>
    %43 = vector.broadcast %42 : vector<1x32xf32> to vector<8x32xf32>
    %44 = arith.mulf %41, %43 : vector<8x32xf32>
    %c0_21 = arith.constant 0 : index
    %c0_22 = arith.constant 0 : index
    %45 = vector.load %arg6[%c0_21, %c0_22] : memref<1x32xf32, #tpu.memory_space<vmem>>, vector<1x32xf32>
    %46 = vector.broadcast %45 : vector<1x32xf32> to vector<8x32xf32>
    %47 = arith.addf %44, %46 : vector<8x32xf32>
    %c0_23 = arith.constant 0 : index
    %c0_24 = arith.constant 0 : index
    %48 = vector.load %arg8[%c0_23, %c0_24] : memref<8x32xf32, #tpu.memory_space<vmem>>, vector<8x32xf32>
    tpu.vector_store %arg8[%c0_23, %c0_24], %47 {strides = array<i32>} : memref<8x32xf32, #tpu.memory_space<vmem>>, vector<8x32xf32>,
    return
  }
  func.func @transform_0(%arg0: i32, %arg1: memref<16xi32, #tpu.memory_space<smem>>) -> (i32, i32) {
    %c0_i32 = arith.constant 0 : i32
    %c0_i32_0 = arith.constant 0 : i32
    return %arg0, %c0_i32 : i32, i32
  }
  func.func @transform_1(%arg0: i32, %arg1: memref<16xi32, #tpu.memory_space<smem>>) -> (i32, i32) {
    %c1_i32 = arith.constant 1 : i32
    %c0_i32 = arith.constant 0 : i32
    %0 = arith.cmpi eq, %c1_i32, %c0_i32 : i32
    %c1_i32_0 = arith.constant 1 : i32
    %1 = arith.select %0, %c1_i32_0, %c1_i32 : i32
    %2 = arith.remsi %arg0, %1 : i32
    %c0_i32_1 = arith.constant 0 : i32
    %3 = arith.cmpi ne, %2, %c0_i32_1 : i32
    %c0_i32_2 = arith.constant 0 : i32
    %4 = arith.cmpi slt, %2, %c0_i32_2 : i32
    %c0_i32_3 = arith.constant 0 : i32
    %5 = arith.cmpi slt, %1, %c0_i32_3 : i32
    %6 = arith.xori %4, %5 : i1
    %7 = arith.andi %6, %3 : i1
    %8 = arith.addi %2, %1 : i32
    %9 = arith.select %7, %8, %2 : i32
    %c0_i32_4 = arith.constant 0 : i32
    %c0_i32_5 = arith.constant 0 : i32
    return %9, %c0_i32_4 : i32, i32
  }
  func.func @transform_2(%arg0: i32, %arg1: memref<16xi32, #tpu.memory_space<smem>>) -> (i32, i32) {
    %c0_i32 = arith.constant 0 : i32
    %c0_i32_0 = arith.constant 0 : i32
    %c0_i32_1 = arith.constant 0 : i32
    return %c0_i32, %c0_i32_0 : i32, i32
  }
  func.func @transform_3(%arg0: i32, %arg1: memref<16xi32, #tpu.memory_space<smem>>) -> (i32, i32) {
    %c0_i32 = arith.constant 0 : i32
    %c0_i32_0 = arith.constant 0 : i32
    %c0_i32_1 = arith.constant 0 : i32
    return %c0_i32, %c0_i32_0 : i32, i32
  }
  func.func @transform_4(%arg0: i32, %arg1: memref<16xi32, #tpu.memory_space<smem>>) -> (i32, i32) {
    %c0_i32 = arith.constant 0 : i32
    %c0_i32_0 = arith.constant 0 : i32
    %c0_i32_1 = arith.constant 0 : i32
    return %c0_i32, %c0_i32_0 : i32, i32
  }
  func.func @transform_6(%arg0: i32, %arg1: memref<16xi32, #tpu.memory_space<smem>>) -> (i32, i32) {
    %c0_i32 = arith.constant 0 : i32
    %c0_i32_0 = arith.constant 0 : i32
    return %arg0, %c0_i32 : i32, i32
  }
}

</mosaic_0001>

<llo_original>
// kernel: tpu_custom_call.1
$region0: #{tpu_custom_call.1}
  #allocation0 [shape = 'u32[]', space=smem, size = 0x4, offset = 0x4, fixed_abs, tag = 'smem constant byte address 0x4 - core index']
  #allocation1 [shape = 'u32[144,128]{1,0:T(1,128)}', space=vmem, size = 0x12000, scoped, tag = 'internal scratch']
  #allocation2 [shape = 'f32[8,32]{1,0:T(8,128)}', space=vmem, size = 0x1000, scoped, tag = 'scratch operand']
  #allocation3 [shape = 's32[1]{0}', space=sflag, size = 0x4, scoped, tag = 'scratch operand']
  #allocation4 [shape = 's32[1]{0}', space=sflag, size = 0x4, scoped, tag = 'scoped memory for tpu_custom_call.1']
  #allocation5 [shape = 'u8[512]{0}', space=smem, size = 0x200, scoped, tag = 'prefetched SMEM operand 0']
  #allocation8 [shape = 's32[]', space=sflag, size = 0x4, offset = 0, fixed_abs, tag = 'sflag constant byte address 0x0 - dummy sync flag']
  %s0 = inlined_call_operand.vmem [shape: s32[16], index: 0, kind: input, shape index: {}]
  %s1 = inlined_call_operand.vmem [shape: s32[16,1], index: 1, kind: input, shape index: {}]
  %s2 = inlined_call_operand.vmem [shape: f32[16,32], index: 2, kind: input, shape index: {}]
  %s3 = inlined_call_operand.vmem [shape: f32[2,32], index: 3, kind: input, shape index: {}]
  %s4 = inlined_call_operand.vmem [shape: f32[1,32], index: 4, kind: input, shape index: {}]
  %s5 = inlined_call_operand.vmem [shape: f32[1,32], index: 5, kind: input, shape index: {}]
  %s6 = inlined_call_operand.vmem [shape: f32[64,32], index: 6, kind: input, shape index: {}]
  %s7 = inlined_call_operand.hbm [shape: f32[16,32], index: 7, kind: output, shape index: {}]
  %s8 = sld [smem:[#allocation0]]
  $region97: #{tpu_custom_call.1} parent=0
    _
  %s10 = ssub.s32 1, %s8
  %s11 = scalar_select 0, %s10, %s8
  %s12 = sshll.u32 %s0, 4
  %s13 = int_to_ptr.vmem [resolvable:$true] %s12
  %15 = dma.vmem_to_smem %s13, 16, [#allocation5], [#allocation4]
  %16 = dma.done [#allocation4], 16
  %17 = sfence
  $region1: #{tpu_custom_call.1} parent=0
    #allocation6 [shape = 'u8[8192]{0}', space=vmem, size = 0x2000, scoped, tag = 'output window, operand 0']
    #allocation7 [shape = 's32[2]{0}', space=sflag, size = 0x8, scoped, tag = 'scoped memory for tpu_custom_call.1']
    %18 = vsyncpa [#allocation7], 0
    %s19 = scalar_lea.sflag [#allocation7], 1
    %20 = vsyncpa %s19, 0
    loop: start=0, step=1, limit=4
    $region2: #{tpu_custom_call.1} parent=1 // loop_pre_header
      _
    $region3: #{tpu_custom_call.1} parent=1 // loop_header
      %s22 = sphi 0, %s26
      %p23 = scmp.ge.s32.totalorder %s22, 4
      %s32 = sphi 0, %s34
      %s35 = sphi 0, %s32
      %s36 = sphi 0, %s35
      %s52 = sphi 0, %s36
      %s56 = sphi 0, %s56
      %s58 = sphi 0, %s56
      %s59 = sphi 0, %s58
      %s73 = sphi 0, %s59
      %s77 = sphi 0, %s77
      %s79 = sphi 0, %s77
      %s80 = sphi 0, %s79
      %s94 = sphi 0, %s80
      %s98 = sphi 0, %s98
      %s100 = sphi 0, %s98
      %s101 = sphi 0, %s100
      %s115 = sphi 0, %s101
      %s119 = sphi 0, %s119
      %s121 = sphi 0, %s119
      %s122 = sphi 0, %s121
      %s136 = sphi 0, %s122
      %s142 = sphi 0, %s144
      %s145 = sphi 0, %s142
      %s146 = sphi 0, %s145
      %s162 = sphi 0, %s146
    $region4: #{tpu_custom_call.1} parent=1 // loop_header_branch
      %25 = sbr.rel (%p23) target = $region8
    $region5: #{tpu_custom_call.1} parent=1 // loop_body
      %s27 = ssub.s32 %s22, 1
      %s28 = ssub.s32 %s22, 2
      %s29 = sadd.s32 %s22, 1
      %s30 = ssub.s32 %s22, %s29
      %p31 = scmp.eq.s32.totalorder %s30, 0
      %s33 = sadd.s32 %s32, 1
      %s34 = scalar_select %p31, %s32, %s33
      %p37 = pneg %p31
      %p38 = scmp.eq.s32.totalorder %s22, 1
      %p39 = por %p37, %p38
      %p40 = scmp.ne.s32.totalorder %s32, %s35
      %p41 = scmp.eq.s32.totalorder %s22, 0
      %p42 = por %p40, %p41
      %p43 = scmp.ne.s32.totalorder %s32, %s35
      %p44 = scmp.eq.s32.totalorder %s27, 1
      %p45 = por %p43, %p44
      %p46 = scmp.ne.s32.totalorder %s35, %s36
      %p47 = scmp.eq.s32.totalorder %s27, 0
      %p48 = por %p46, %p47
      %p49 = scmp.ne.s32.totalorder %s35, %s36
      %p50 = scmp.eq.s32.totalorder %s28, 1
      %p51 = por %p49, %p50
      %p53 = scmp.ne.s32.totalorder %s36, %s52
      %p54 = scmp.eq.s32.totalorder %s28, 0
      %p55 = por %p53, %p54
      %s57 = sadd.s32 %s56, 1
      %p60 = scmp.eq.s32.totalorder %s22, 1
      %p61 = scmp.ne.s32.totalorder %s56, %s58
      %p62 = scmp.eq.s32.totalorder %s22, 0
      %p63 = por %p61, %p62
      %p64 = scmp.ne.s32.totalorder %s56, %s58
      %p65 = scmp.eq.s32.totalorder %s27, 1
      %p66 = por %p64, %p65
      %p67 = scmp.ne.s32.totalorder %s58, %s59
      %p68 = scmp.eq.s32.totalorder %s27, 0
      %p69 = por %p67, %p68
      %p70 = scmp.ne.s32.totalorder %s58, %s59
      %p71 = scmp.eq.s32.totalorder %s28, 1
      %p72 = por %p70, %p71
      %p74 = scmp.ne.s32.totalorder %s59, %s73
      %p75 = scmp.eq.s32.totalorder %s28, 0
      %p76 = por %p74, %p75
      %s78 = sadd.s32 %s77, 1
      %p81 = scmp.eq.s32.totalorder %s22, 1
      %p82 = scmp.ne.s32.totalorder %s77, %s79
      %p83 = scmp.eq.s32.totalorder %s22, 0
      %p84 = por %p82, %p83
      %p85 = scmp.ne.s32.totalorder %s77, %s79
      %p86 = scmp.eq.s32.totalorder %s27, 1
      %p87 = por %p85, %p86
      %p88 = scmp.ne.s32.totalorder %s79, %s80
      %p89 = scmp.eq.s32.totalorder %s27, 0
      %p90 = por %p88, %p89
      %p91 = scmp.ne.s32.totalorder %s79, %s80
      %p92 = scmp.eq.s32.totalorder %s28, 1
      %p93 = por %p91, %p92
      %p95 = scmp.ne.s32.totalorder %s80, %s94
      %p96 = scmp.eq.s32.totalorder %s28, 0
      %p97 = por %p95, %p96
      %s99 = sadd.s32 %s98, 1
      %p102 = scmp.eq.s32.totalorder %s22, 1
      %p103 = scmp.ne.s32.totalorder %s98, %s100
      %p104 = scmp.eq.s32.totalorder %s22, 0
      %p105 = por %p103, %p104
      %p106 = scmp.ne.s32.totalorder %s98, %s100
      %p107 = scmp.eq.s32.totalorder %s27, 1
      %p108 = por %p106, %p107
      %p109 = scmp.ne.s32.totalorder %s100, %s101
      %p110 = scmp.eq.s32.totalorder %s27, 0
      %p111 = por %p109, %p110
      %p112 = scmp.ne.s32.totalorder %s100, %s101
      %p113 = scmp.eq.s32.totalorder %s28, 1
      %p114 = por %p112, %p113
      %p116 = scmp.ne.s32.totalorder %s101, %s115
      %p117 = scmp.eq.s32.totalorder %s28, 0
      %p118 = por %p116, %p117
      %s120 = sadd.s32 %s119, 1
      %p123 = scmp.eq.s32.totalorder %s22, 1
      %p124 = scmp.ne.s32.totalorder %s119, %s121
      %p125 = scmp.eq.s32.totalorder %s22, 0
      %p126 = por %p124, %p125
      %p127 = scmp.ne.s32.totalorder %s119, %s121
      %p128 = scmp.eq.s32.totalorder %s27, 1
      %p129 = por %p127, %p128
      %p130 = scmp.ne.s32.totalorder %s121, %s122
      %p131 = scmp.eq.s32.totalorder %s27, 0
      %p132 = por %p130, %p131
      %p133 = scmp.ne.s32.totalorder %s121, %s122
      %p134 = scmp.eq.s32.totalorder %s28, 1
      %p135 = por %p133, %p134
      %p137 = scmp.ne.s32.totalorder %s122, %s136
      %p138 = scmp.eq.s32.totalorder %s28, 0
      %p139 = por %p137, %p138
      %s140 = ssub.s32 %s22, %s29
      %p141 = scmp.eq.s32.totalorder %s140, 0
      %s143 = sadd.s32 %s142, 1
      %s144 = scalar_select %p141, %s142, %s143
      %p147 = pneg %p141
      %p148 = scmp.eq.s32.totalorder %s22, 1
      %p149 = por %p147, %p148
      %p150 = scmp.ne.s32.totalorder %s142, %s145
      %p151 = scmp.eq.s32.totalorder %s22, 0
      %p152 = por %p150, %p151
      %p153 = scmp.ne.s32.totalorder %s142, %s145
      %p154 = scmp.eq.s32.totalorder %s27, 1
      %p155 = por %p153, %p154
      %p156 = scmp.ne.s32.totalorder %s145, %s146
      %p157 = scmp.eq.s32.totalorder %s27, 0
      %p158 = por %p156, %p157
      %p159 = scmp.ne.s32.totalorder %s145, %s146
      %p160 = scmp.eq.s32.totalorder %s28, 1
      %p161 = por %p159, %p160
      %p163 = scmp.ne.s32.totalorder %s146, %s162
      %p164 = scmp.eq.s32.totalorder %s28, 0
      %p165 = por %p163, %p164
      %p166 = scmp.le.s32.totalorder 1, %s22
      %p167 = scmp.lt.s32.totalorder %s22, 3
      %p168 = pnand %p166, %p167
      %p169 = pneg %p168
      // Predicated region
      $region9: #{tpu_custom_call.1} parent=5 // pred_check
        _
      $region10: #{tpu_custom_call.1} parent=5 // pred_check_branch
        %171 = sbr.rel (%p168) target = $region12
      $region11: #{tpu_custom_call.1} parent=5 // pred_region
        %s172 = ssub.s32 %s22, 1
        // Predicated region
        $region13: #{tpu_custom_call.1} parent=11 // pred_check
          %p173 = pneg %p69
        $region14: #{tpu_custom_call.1} parent=11 // pred_check_branch
          %175 = sbr.rel (%p173) target = $region16
        $region15: #{tpu_custom_call.1} parent=11 // pred_region
          _
        $region16: #{tpu_custom_call.1} parent=11 // pred_fallthru
          _
        // Predicated region
        $region17: #{tpu_custom_call.1} parent=11 // pred_check
          %p176 = pneg %p90
        $region18: #{tpu_custom_call.1} parent=11 // pred_check_branch
          %178 = sbr.rel (%p176) target = $region20
        $region19: #{tpu_custom_call.1} parent=11 // pred_region
          _
        $region20: #{tpu_custom_call.1} parent=11 // pred_fallthru
          _
        // Predicated region
        $region21: #{tpu_custom_call.1} parent=11 // pred_check
          %p179 = pneg %p111
        $region22: #{tpu_custom_call.1} parent=11 // pred_check_branch
          %181 = sbr.rel (%p179) target = $region24
        $region23: #{tpu_custom_call.1} parent=11 // pred_region
          _
        $region24: #{tpu_custom_call.1} parent=11 // pred_fallthru
          _
        // Predicated region
        $region25: #{tpu_custom_call.1} parent=11 // pred_check
          %p182 = pneg %p132
        $region26: #{tpu_custom_call.1} parent=11 // pred_check_branch
          %184 = sbr.rel (%p182) target = $region28
        $region27: #{tpu_custom_call.1} parent=11 // pred_region
          _
        $region28: #{tpu_custom_call.1} parent=11 // pred_fallthru
          _
      $region12: #{tpu_custom_call.1} parent=5 // pred_fallthru
        _
      %p185 = scmp.lt.s32.totalorder %s22, 2
      // Predicated region
      $region29: #{tpu_custom_call.1} parent=5 // pred_check
        %p186 = pneg %p185
      $region30: #{tpu_custom_call.1} parent=5 // pred_check_branch
        %188 = sbr.rel (%p186) target = $region32
      $region31: #{tpu_custom_call.1} parent=5 // pred_region
        // Predicated region
        $region33: #{tpu_custom_call.1} parent=31 // pred_check
          %p189 = pneg %p42
        $region34: #{tpu_custom_call.1} parent=31 // pred_check_branch
          %191 = sbr.rel (%p189) target = $region36
        $region35: #{tpu_custom_call.1} parent=31 // pred_region
          %p192 = scmp.lt.s32.totalorder %s22, 1
          %s193 = scalar_select %p192, %s22, 1
          %s194 = smul.addr %s193, 8
          %s195 = scalar_lea.vmem %s1, %s194
        $region36: #{tpu_custom_call.1} parent=31 // pred_fallthru
          _
      $region32: #{tpu_custom_call.1} parent=5 // pred_fallthru
        _
      %p196 = scmp.le.s32.totalorder 1, %s22
      %p197 = scmp.lt.s32.totalorder %s22, 3
      %p198 = pnand %p196, %p197
      %p199 = pneg %p198
      // Predicated region
      $region37: #{tpu_custom_call.1} parent=5 // pred_check
        _
      $region38: #{tpu_custom_call.1} parent=5 // pred_check_branch
        %201 = sbr.rel (%p198) target = $region40
      $region39: #{tpu_custom_call.1} parent=5 // pred_region
        %s202 = ssub.s32 %s22, 1
        %p203 = scmp.lt.s32.totalorder %s27, 1
        %s204 = scalar_select %p203, %s27, 1
        %s205 = smul.addr %s204, 8
        %s206 = scalar_lea.vmem %s1, %s205
        %p207 = pneg %p48
        %p208 = pneg %p45
        %p209 = pneg %p69
        %p210 = pneg %p66
        %p211 = pneg %p90
        %p212 = pneg %p87
        %p213 = pneg %p111
        %p214 = pneg %p108
        %p215 = pneg %p132
        %p216 = pneg %p129
        %p217 = pneg %p158
        %p218 = pneg %p155
        %s219 = sand.u32 %s145, 1
        %s220 = scalar_lea.sflag [#allocation7], %s219
        %s221 = sand.u32 %s145, 1
        %s222 = smul.addr %s221, 8
        %s223 = scalar_lea.vmem [#allocation6], %s222
        %p224 = scmp.lt.s32.totalorder %s27, 1
        %s225 = scalar_select %p224, %s27, 1
        %s226 = smul.addr %s225, 8
        %s227 = scalar_lea.vmem %s1, %s226
        %s228 = smul.u32 %s27, 8
        loop: start=0, step=1, limit=8
        $region41: #{tpu_custom_call.1} parent=39 // loop_pre_header
          _
        $region42: #{tpu_custom_call.1} parent=39 // loop_header
          %s230 = sphi 0, %s234
          %p231 = scmp.ge.s32.totalorder %s230, 8
        $region43: #{tpu_custom_call.1} parent=39 // loop_header_branch
          %233 = sbr.rel (%p231) target = $region47
        $region44: #{tpu_custom_call.1} parent=39 // loop_body
          %s235 = sadd.s32 %s228, %s230
          %s236 = sld [smem:[#allocation5 + %s235]]
          %s237 = scalar_lea.vmem %s6, %s236
          %s238 = scalar_lea.vmem [#allocation2], %s230
          %p240 = scmp.lt.u32.totalorder 1, 8
          %p241 = pneg %p240
          // Predicated region
          $region48: #{tpu_custom_call.1} parent=44 // pred_check
            _
          $region49: #{tpu_custom_call.1} parent=44 // pred_check_branch
            %243 = sbr.rel (%p240) target = $region51
          $region50: #{tpu_custom_call.1} parent=44 // pred_region
            %s258 = sand.u32 1, 7
            %p259 = scmp.eq.s32.totalorder %s258, 0
            %p260 = pneg %p259
            // Predicated region
            $region63: #{tpu_custom_call.1} parent=50 // pred_check
              _
            $region64: #{tpu_custom_call.1} parent=50 // pred_check_branch
              %262 = sbr.rel (%p259) target = $region66
            $region65: #{tpu_custom_call.1} parent=50 // pred_region
              %s263 = sand.u32 1, 7
              %s264 = ssub.s32 1, %s263
              %s265 = scalar_lea.vmem %s237, %s264
              %s266 = ssub.s32 1, %s263
              %s267 = scalar_lea.vmem %s238, %s266 [#allocation2]
              %s268 = sshllo.u32 0, %s263
              loop: start=0, step=1, limit=1
              $region67: #{tpu_custom_call.1} parent=65 // loop_pre_header
                _
              $region68: #{tpu_custom_call.1} parent=65 // loop_header
                %s270 = sphi 0, %s274
                %p271 = scmp.ge.s32.totalorder %s270, 1
                %s275 = sphi %s265, %s265
                %s276 = sphi %s267, %s267
              $region69: #{tpu_custom_call.1} parent=65 // loop_header_branch
                %273 = sbr.rel (%p271) target = $region73
              $region70: #{tpu_custom_call.1} parent=65 // loop_body
                %v277 = vld [vmem:[%s275] sm:%s268]
                %278 = vst [vmem:[%s276] sm:%s268] %v277
              $region71: #{tpu_custom_call.1} parent=65 // loop_footer
                %s274 = sadd.s32 1, %s270
              $region72: #{tpu_custom_call.1} parent=65 // loop_footer_branch
                %269 = sbr.rel target = $region68
              $region73: #{tpu_custom_call.1} parent=65 // loop_exit
                _
            $region66: #{tpu_custom_call.1} parent=50 // pred_fallthru
              _
          $region51: #{tpu_custom_call.1} parent=44 // pred_fallthru
            _
          // Predicated region
          $region52: #{tpu_custom_call.1} parent=44 // pred_check
            %p244 = pneg %p240
          $region53: #{tpu_custom_call.1} parent=44 // pred_check_branch
            %246 = sbr.rel (%p244) target = $region55
          $region54: #{tpu_custom_call.1} parent=44 // pred_region
            %s247 = sshllo.u32 0, 1
            loop: start=0, step=1, limit=1
            $region56: #{tpu_custom_call.1} parent=54 // loop_pre_header
              _
            $region57: #{tpu_custom_call.1} parent=54 // loop_header
              %s249 = sphi 0, %s253
              %p250 = scmp.ge.s32.totalorder %s249, 1
              %s254 = sphi %s237, %s237
              %s255 = sphi %s238, %s238
            $region58: #{tpu_custom_call.1} parent=54 // loop_header_branch
              %252 = sbr.rel (%p250) target = $region62
            $region59: #{tpu_custom_call.1} parent=54 // loop_body
              %v256 = vld [vmem:[%s254] sm:%s247]
              %257 = vst [vmem:[%s255] sm:%s247] %v256
            $region60: #{tpu_custom_call.1} parent=54 // loop_footer
              %s253 = sadd.s32 1, %s249
            $region61: #{tpu_custom_call.1} parent=54 // loop_footer_branch
              %248 = sbr.rel target = $region57
            $region62: #{tpu_custom_call.1} parent=54 // loop_exit
              _
          $region55: #{tpu_custom_call.1} parent=44 // pred_fallthru
            _
          // Predicated region
          $region74: #{tpu_custom_call.1} parent=44 // pred_check
            _
          $region75: #{tpu_custom_call.1} parent=44 // pred_check_branch
            %281 = sbr.rel (0) target = $region77
          $region76: #{tpu_custom_call.1} parent=44 // pred_region
            %282 = vsyncadd [#allocation3], 16
          $region77: #{tpu_custom_call.1} parent=44 // pred_fallthru
            _
        $region45: #{tpu_custom_call.1} parent=39 // loop_footer
          %s234 = sadd.s32 1, %s230
        $region46: #{tpu_custom_call.1} parent=39 // loop_footer_branch
          %229 = sbr.rel target = $region42
        $region47: #{tpu_custom_call.1} parent=39 // loop_exit
          _
        %v283 = vld [vmem:[%s227] sm:$0xff]
        %v284 = vld [vmem:[%s3] sm:$0x3]
        %v285 = vld [vmem:[%s2] sm:$0xff]
        %vm286 = vcmp.eq.s32.totalorder %v283, 0
        %v287 = vsel %vm286, 1, 0
        %v288 = vcvt.s32.f32 %v287
        %290 = vset.pattern.permute.xlu0 0
        %291 = vperm.xlu0 %290, %v288
        %v292 = vpop.permute.xlu0 %291
        %v294 = vlaneseq
        %v295 = vshrl.u32 %v294, 7
        %v296 = vsub.s32 0, %v295
        %v297 = vrot.slane %v284, %v296
        %v298 = vmul.f32 %v292, %v297
        %v299 = vadd.f32 %v285, %v298
        %vm300 = vcmp.eq.s32.totalorder %v283, 1
        %v301 = vsel %vm300, 1, 0
        %v302 = vcvt.s32.f32 %v301
        %304 = vset.pattern.permute.xlu0 0
        %305 = vperm.xlu0 %304, %v302
        %v306 = vpop.permute.xlu0 %305
        %v308 = vlaneseq
        %v309 = vshrl.u32 %v308, 7
        %v310 = vsub.s32 1, %v309
        %v311 = vrot.slane %v284, %v310
        %v312 = vmul.f32 %v306, %v311
        %v313 = vadd.f32 %v299, %v312
        loop: start=0, step=1, limit=8
        $region78: #{tpu_custom_call.1} parent=39 // loop_pre_header
          _
        $region79: #{tpu_custom_call.1} parent=39 // loop_header
          %s315 = sphi 0, %s319
          %p316 = scmp.ge.s32.totalorder %s315, 8
        $region80: #{tpu_custom_call.1} parent=39 // loop_header_branch
          %318 = sbr.rel (%p316) target = $region84
        $region81: #{tpu_custom_call.1} parent=39 // loop_body
          %s320 = smul.u32 1, 1
          %s321 = sshll.u32 %s320, 4
          %322 = dma.done [#allocation3], %s321
        $region82: #{tpu_custom_call.1} parent=39 // loop_footer
          %s319 = sadd.s32 1, %s315
        $region83: #{tpu_custom_call.1} parent=39 // loop_footer_branch
          %314 = sbr.rel target = $region79
        $region84: #{tpu_custom_call.1} parent=39 // loop_exit
          _
        %v323 = vld [vmem:[#allocation2] sm:$0xff]
        %v324 = vadd.f32 %v323, %v313
        %vm325 = vcmask 261120
        %v326 = vsel %vm325, %v324, 0.0
        %327 = vadd.xlane.f32.xlu0 %v326
        %v328 = vpop.xlane.xlu0 %327
        %v329 = vrcp.pop 32.0
        %v330 = vmul.f32 %v328, %v329
        %v331 = vsub.f32 %v324, %v330
        %v332 = vmul.f32 %v331, %v331
        %v333 = vsel %vm325, %v332, 0.0
        %334 = vadd.xlane.f32.xlu0 %v333
        %v335 = vpop.xlane.xlu0 %334
        %v336 = vmul.f32 %v335, %v329
        %v337 = vadd.f32 %v336, 1e-12
        %v338 = vrsqrt.pop %v337
        %v339 = vmul.f32 %v331, %v338
        %v340 = vld [vmem:[%s4] sm:$0x1]
        %v342 = vlaneseq
        %v343 = vshrl.u32 %v342, 7
        %v344 = vsub.s32 0, %v343
        %v345 = vrot.slane %v340, %v344
        %v347 = vmul.f32 %v339, %v345
        %v348 = vld [vmem:[%s5] sm:$0x1]
        %v350 = vlaneseq
        %v351 = vshrl.u32 %v350, 7
        %v352 = vsub.s32 0, %v351
        %v353 = vrot.slane %v348, %v352
        %v355 = vadd.f32 %v347, %v353
        %356 = vst.msk [vmem:[%s223] sm:$0xff] %vm325, %v355
        %s357 = sand.u32 %s145, 1
        %s358 = scalar_lea.sflag [#allocation7], %s357
        %s359 = sand.u32 %s145, 1
        %s360 = smul.addr %s359, 8
        %s361 = scalar_lea.vmem [#allocation6], %s360
        // Predicated region
        $region85: #{tpu_custom_call.1} parent=39 // pred_check
          %p362 = pneg %p155
        $region86: #{tpu_custom_call.1} parent=39 // pred_check_branch
          %364 = sbr.rel (%p362) target = $region88
        $region87: #{tpu_custom_call.1} parent=39 // pred_region
          %s366 = ssub.s32 128, 128
          %367 = vsyncadd %s358, %s366
          %s368 = smul.addr %s27, 128
          %s369 = scalar_lea.hbm %s7, %s368
          %s371 = sshll.u32 %s361, 4
          %s372 = int_to_ptr.vmem [resolvable:$true] %s371
          %374 = dma.vmem_to_hbm [thread:$0]  %s372, 128, %s369, %s358
        $region88: #{tpu_custom_call.1} parent=39 // pred_fallthru
          _
      $region40: #{tpu_custom_call.1} parent=5 // pred_fallthru
        _
      %p375 = scmp.le.s32.totalorder 2, %s22
      // Predicated region
      $region89: #{tpu_custom_call.1} parent=5 // pred_check
        %p376 = pneg %p375
      $region90: #{tpu_custom_call.1} parent=5 // pred_check_branch
        %378 = sbr.rel (%p376) target = $region92
      $region91: #{tpu_custom_call.1} parent=5 // pred_region
        %s379 = ssub.s32 %s22, 2
        // Predicated region
        $region93: #{tpu_custom_call.1} parent=91 // pred_check
          %p380 = pneg %p161
        $region94: #{tpu_custom_call.1} parent=91 // pred_check_branch
          %382 = sbr.rel (%p380) target = $region96
        $region95: #{tpu_custom_call.1} parent=91 // pred_region
          %s383 = sand.u32 %s146, 1
          %s384 = scalar_lea.sflag [#allocation7], %s383
          %s385 = sand.u32 %s146, 1
          %s386 = smul.addr %s385, 8
          %s387 = scalar_lea.vmem [#allocation6], %s386
          %388 = dma.done %s384, 128
        $region96: #{tpu_custom_call.1} parent=91 // pred_fallthru
          _
      $region92: #{tpu_custom_call.1} parent=5 // pred_fallthru
        _
    $region6: #{tpu_custom_call.1} parent=1 // loop_footer
      %s26 = sadd.s32 1, %s22
    $region7: #{tpu_custom_call.1} parent=1 // loop_footer_branch
      %21 = sbr.rel target = $region3
    $region8: #{tpu_custom_call.1} parent=1 // loop_exit
      _
    %389 = vsyncpa [#allocation7], 1
    %s390 = scalar_lea.sflag [#allocation7], 1
    %391 = vsyncpa %s390, 1
  %392 = vsyncmov [#allocation3]
  %s393 = vpop.sfrf %392
  %p394 = scmp.eq.s32.totalorder %s393, 0
  %p395 = pneg %p394
  %397 = shalt.err (%p395)

</llo_original>
